<compile_context>
chip_gen: v5e
topology: v5e:2x2
jax: 0.10.0
libtpu: 0.0.40
codegen_flags: <defaults>
</compile_context>

<pallas_src>
import functools

import jax
import jax.numpy as jnp
from jax.experimental import pallas as pl
from jax.experimental.pallas import tpu as pltpu

BN_EPS = 1e-5
TASK_PAD = 128          # lane-dense output padding


# ------------------------------ Pallas kernel -------------------------------

def fused_gine_kernel(c_ref,               # [N, N+E] bf16  ([A | B])
                      m_ref,               # [G, N]   bf16  (mean-pool rows)
                      h0_ref,              # [N, D]   f32   (initial node emb)
                      e_ref,               # [L, E, D] f32  (per-layer edge emb)
                      w1_ref, b1_ref,      # [L, D, 2D], [L, 1, 2D]
                      w2_ref, b2_ref,      # [L, 2D, D], [L, 1, D]  (BN folded)
                      s_ref,               # [N, S] bf16    (smodel embedding)
                      ww_ref,              # [S, D] bf16
                      bw_ref,              # [1, D] f32
                      wp_ref,              # [D, TASK_PAD] f32 (zero-padded)
                      bp_ref,              # [1, TASK_PAD] f32 (zero-padded)
                      out_ref,             # [G, TASK_PAD] f32
                      stacked_ref,         # scratch VMEM [(N+E), D] bf16
                      h_ref,               # scratch VMEM [N, D] f32
                      *, num_layers):
    n = h0_ref.shape[0]
    h_ref[...] = h0_ref[...]

    for l in range(num_layers):   # static, fully unrolled (num_layers is tiny)
        # message passing:  agg = A @ h + B @ e_l  ==  [A | B] @ [h ; e_l]
        stacked_ref[:n, :] = h_ref[...].astype(jnp.bfloat16)
        stacked_ref[n:, :] = e_ref[l].astype(jnp.bfloat16)
        agg = jnp.dot(c_ref[...], stacked_ref[...],
                      preferred_element_type=jnp.float32)
        # MLP: Linear(D, 2D) -> ReLU -> Linear(2D, D); BN folded into W2/b2
        z = jnp.maximum(
            jnp.dot(agg, w1_ref[l], preferred_element_type=jnp.float32)
            + b1_ref[l], 0.0)
        y = (jnp.dot(z, w2_ref[l], preferred_element_type=jnp.float32)
             + b2_ref[l])
        if l < num_layers - 1:    # inter-layer ReLU (dropout = identity, eval)
            y = jnp.maximum(y, 0.0)
        h_ref[...] = y

    # head: node_feats = h + Linear_w(s_emb); mean readout; predict (lane-padded)
    nf = (jnp.dot(s_ref[...], ww_ref[...], preferred_element_type=jnp.float32)
          + bw_ref[...])
    node = h_ref[...] + nf
    graph = jnp.dot(m_ref[...], node.astype(jnp.bfloat16),
                    preferred_element_type=jnp.float32)
    out_ref[...] = (jnp.dot(graph, wp_ref[...],
                            preferred_element_type=jnp.float32) + bp_ref[...])


# ------------------------------ wrapper --------------------------------------

def gine_s_forward(C, M, h0, e_stack, W1s, b1s, W2s, b2s,
                   s_emb_bf, Ww_bf, bw, Wp_pad, bp_pad,
                   *, num_layers, n_tasks):
    N, D = h0.shape
    NE = C.shape[1]
    G = M.shape[0]
    TP = Wp_pad.shape[1]
    vmem = pl.BlockSpec(memory_space=pltpu.MemorySpace.VMEM)
    out_padded = pl.pallas_call(
        functools.partial(fused_gine_kernel, num_layers=num_layers),
        out_shape=jax.ShapeDtypeStruct((G, TP), jnp.float32),
        in_specs=[vmem] * 13,
        out_specs=vmem,
        scratch_shapes=[pltpu.VMEM((NE, D), jnp.bfloat16),
                        pltpu.VMEM((N, D), jnp.float32)],
    )(C, M, h0, e_stack, W1s, b1s, W2s, b2s, s_emb_bf, Ww_bf, bw, Wp_pad, bp_pad)
    return out_padded[:, :n_tasks]


# ------------------------------ parameter init -------------------------------

def xavier_uniform(key, shape):
    fan_in, fan_out = shape
    bound = (6.0 / (fan_in + fan_out)) ** 0.5
    return jax.random.uniform(key, shape, jnp.float32, -bound, bound)


def linear_params(key, fin, fout):
    k1, k2 = jax.random.split(key)
    bound = 1.0 / (fin ** 0.5)
    W = jax.random.uniform(k1, (fin, fout), jnp.float32, -bound, bound)
    b = jax.random.uniform(k2, (1, fout), jnp.float32, -bound, bound)
    return W, b


def fold_bn_into_linear(W2, b2, gamma, beta, rmean, rvar):
    """Eval-mode BN(y) with y = x@W2 + b2  ->  x@W2' + b2' (bit-identical)."""
    scale = gamma * jax.lax.rsqrt(rvar + BN_EPS)       # [1, D]
    W2f = W2 * scale                                   # scales output columns
    b2f = (b2 - rmean) * scale + beta
    return W2f, b2f


# ------------------------------ pure-JAX reference ---------------------------

def reference_forward(A, B, M, h0, e_list, layers, s_emb, Ww, bw, Wp, bp,
                      *, num_layers):
    h = h0
    for l in range(num_layers):
        agg = A @ h + B @ e_list[l]
        z = jnp.maximum(agg @ layers[l]["W1"] + layers[l]["b1"], 0.0)
        y = z @ layers[l]["W2"] + layers[l]["b2"]
        y = ((y - layers[l]["rmean"]) * jax.lax.rsqrt(layers[l]["rvar"] + BN_EPS)
             * layers[l]["gamma"] + layers[l]["beta"])
        if l < num_layers - 1:
            y = jnp.maximum(y, 0.0)
        h = y
    node = h + (s_emb @ Ww + bw)
    graph = M @ node
    return graph @ Wp + bp


# ------------------------------ main ------------------------------------------

if __name__ == "__main__":
    key = jax.random.PRNGKey(0)
    keys = iter(jax.random.split(key, 64))

    # module config (small, but respects num_layers >= 2)
    num_node_emb_list = [10, 5]
    num_edge_emb_list = [4, 3]
    num_layers = 2
    emb_dim = 32
    n_tasks = 1
    S_DIM = 256                       # smodel.embed width (w: Linear(256, emb_dim))

    # synthetic batched graph: 2 ring graphs of 8 nodes, bidirectional edges
    G, nodes_per_graph = 2, 8
    N = G * nodes_per_graph           # 16 nodes
    src, dst = [], []
    for gi in range(G):
        base = gi * nodes_per_graph
        for i in range(nodes_per_graph):
            u, v = base + i, base + (i + 1) % nodes_per_graph
            src += [u, v]
            dst += [v, u]
    E = len(src)                      # 32 directed edges
    src = jnp.array(src, jnp.int32)
    dst = jnp.array(dst, jnp.int32)

    A = jnp.zeros((N, N), jnp.float32).at[dst, src].add(1.0)            # dst x src
    B = jnp.zeros((N, E), jnp.float32).at[dst, jnp.arange(E)].set(1.0)  # dst x edge
    graph_ids = jnp.repeat(jnp.arange(G), nodes_per_graph)
    M = jnp.zeros((G, N), jnp.float32).at[graph_ids, jnp.arange(N)].set(1.0)
    M = M / M.sum(axis=1, keepdims=True)                                # mean pool

    # categorical inputs (module does x.long().split(1, -1).squeeze())
    x = jnp.stack([jax.random.randint(next(keys), (N,), 0, n)
                   for n in num_node_emb_list], axis=-1)                # [N, 2]
    w = jnp.stack([jax.random.randint(next(keys), (E,), 0, n)
                   for n in num_edge_emb_list], axis=-1)                # [E, 2]

    # GIN parameters
    node_emb_tables = [xavier_uniform(next(keys), (n, emb_dim))
                       for n in num_node_emb_list]
    layers = []
    for _ in range(num_layers):
        edge_tables = [xavier_uniform(next(keys), (n, emb_dim))
                       for n in num_edge_emb_list]
        W1, b1 = linear_params(next(keys), emb_dim, 2 * emb_dim)
        W2, b2 = linear_params(next(keys), 2 * emb_dim, emb_dim)
        layers.append(dict(
            edge_tables=edge_tables, W1=W1, b1=b1, W2=W2, b2=b2,
            gamma=jax.random.uniform(next(keys), (1, emb_dim), jnp.float32, 0.5, 1.5),
            beta=0.1 * jax.random.normal(next(keys), (1, emb_dim), jnp.float32),
            rmean=0.1 * jax.random.normal(next(keys), (1, emb_dim), jnp.float32),
            rvar=jax.random.uniform(next(keys), (1, emb_dim), jnp.float32, 0.5, 1.5),
        ))

    # head params: self.w = Linear(256, emb_dim), self.predict = Linear(emb_dim, n_tasks)
    Ww, bw = linear_params(next(keys), S_DIM, emb_dim)
    Wp, bp = linear_params(next(keys), emb_dim, n_tasks)

    # TODO(synk): original loads `self.smodel` from 'save/s_model/s_model.pkl';
    # substitute its detached 256-d node embedding with deterministic random data.
    s_emb = jax.random.normal(next(keys), (N, S_DIM), jnp.float32)

    # ------------------- parameter prep (glue, runs once) --------------------
    # node / per-layer edge embedding lookups (gather glue in plain JAX)
    h0 = sum(tab[x[:, i]] for i, tab in enumerate(node_emb_tables))     # [N, D]
    e_stack = jnp.stack(
        [sum(tab[w[:, i]] for i, tab in enumerate(layer["edge_tables"]))
         for layer in layers], axis=0)                                  # [L, E, D]

    # fold eval BatchNorm into the second Linear of each layer; stack params
    W2f_b2f = [fold_bn_into_linear(l["W2"], l["b2"], l["gamma"], l["beta"],
                                   l["rmean"], l["rvar"]) for l in layers]
    W1s = jnp.stack([l["W1"] for l in layers])                          # [L, D, 2D]
    b1s = jnp.stack([l["b1"] for l in layers])                          # [L, 1, 2D]
    W2s = jnp.stack([wf for wf, _ in W2f_b2f])                          # [L, 2D, D]
    b2s = jnp.stack([bf for _, bf in W2f_b2f])                          # [L, 1, D]

    # structural / large operands in bf16 (MXU-native on v5e/v6e/v7x)
    C = jnp.concatenate([A, B], axis=1).astype(jnp.bfloat16)            # [N, N+E]
    M_bf = M.astype(jnp.bfloat16)
    s_emb_bf = s_emb.astype(jnp.bfloat16)
    Ww_bf = Ww.astype(jnp.bfloat16)

    # lane-dense (128-wide) predict head
    Wp_pad = jnp.zeros((emb_dim, TASK_PAD), jnp.float32).at[:, :n_tasks].set(Wp)
    bp_pad = jnp.zeros((1, TASK_PAD), jnp.float32).at[:, :n_tasks].set(bp)

    # ------------------------------ forward ----------------------------------
    out = gine_s_forward(C, M_bf, h0, e_stack, W1s, b1s, W2s, b2s,
                         s_emb_bf, Ww_bf, bw, Wp_pad, bp_pad,
                         num_layers=num_layers, n_tasks=n_tasks)        # [G, n_tasks]
    out = jax.block_until_ready(out)

    # correctness check against a pure-JAX f32 reference (loose: bf16 operands)
    ref = reference_forward(A, B, M, h0, list(e_stack), layers,
                            s_emb, Ww, bw, Wp, bp, num_layers=num_layers)
    assert out.shape == (G, n_tasks)
    max_err = float(jnp.max(jnp.abs(out - ref)))
    assert max_err < 1e-1, f"max abs error too large: {max_err}"

    print("KERNEL_OK")
</pallas_src>

<mosaic_0001>
module attributes {stable_mosaic.version = 11 : i64} {
  func.func @fused_gine_kernel(%arg0: memref<16x48xbf16, #tpu.memory_space<vmem>>, %arg1: memref<2x16xbf16, #tpu.memory_space<vmem>>, %arg2: memref<16x32xf32, #tpu.memory_space<vmem>>, %arg3: memref<2x32x32xf32, #tpu.memory_space<vmem>>, %arg4: memref<2x32x64xf32, #tpu.memory_space<vmem>>, %arg5: memref<2x1x64xf32, #tpu.memory_space<vmem>>, %arg6: memref<2x64x32xf32, #tpu.memory_space<vmem>>, %arg7: memref<2x1x32xf32, #tpu.memory_space<vmem>>, %arg8: memref<16x256xbf16, #tpu.memory_space<vmem>>, %arg9: memref<256x32xbf16, #tpu.memory_space<vmem>>, %arg10: memref<1x32xf32, #tpu.memory_space<vmem>>, %arg11: memref<32x128xf32, #tpu.memory_space<vmem>>, %arg12: memref<1x128xf32, #tpu.memory_space<vmem>>, %arg13: memref<2x128xf32, #tpu.memory_space<vmem>>, %arg14: memref<48x32xbf16, #tpu.memory_space<vmem>>, %arg15: memref<16x32xf32, #tpu.memory_space<vmem>>) attributes {dimension_semantics = [], scalar_prefetch = 0 : i64, scratch_operands = 2 : i64, tpu.core_type = #tpu.core_type<tc>} {
    %c0 = arith.constant 0 : index
    %c0_0 = arith.constant 0 : index
    %0 = vector.load %arg2[%c0, %c0_0] : memref<16x32xf32, #tpu.memory_space<vmem>>, vector<16x32xf32>
    %c0_1 = arith.constant 0 : index
    %c0_2 = arith.constant 0 : index
    %1 = vector.load %arg15[%c0_1, %c0_2] : memref<16x32xf32, #tpu.memory_space<vmem>>, vector<16x32xf32>
    tpu.vector_store %arg15[%c0_1, %c0_2], %0 {strides = array<i32>} : memref<16x32xf32, #tpu.memory_space<vmem>>, vector<16x32xf32>,
    %c0_3 = arith.constant 0 : index
    %c0_4 = arith.constant 0 : index
    %2 = vector.load %arg15[%c0_3, %c0_4] : memref<16x32xf32, #tpu.memory_space<vmem>>, vector<16x32xf32>
    %3 = arith.truncf %2 : vector<16x32xf32> to vector<16x32xbf16>
    %c0_5 = arith.constant 0 : index
    %c0_6 = arith.constant 0 : index
    %4 = vector.load %arg14[%c0_5, %c0_6] : memref<48x32xbf16, #tpu.memory_space<vmem>>, vector<16x32xbf16>
    tpu.vector_store %arg14[%c0_5, %c0_6], %3 {strides = array<i32>} : memref<48x32xbf16, #tpu.memory_space<vmem>>, vector<16x32xbf16>,
    %c0_7 = arith.constant 0 : index
    %c0_8 = arith.constant 0 : index
    %c0_9 = arith.constant 0 : index
    %5 = vector.load %arg3[%c0_7, %c0_8, %c0_9] : memref<2x32x32xf32, #tpu.memory_space<vmem>>, vector<1x32x32xf32>
    %6 = vector.shape_cast %5 : vector<1x32x32xf32> to vector<32x32xf32>
    %7 = arith.truncf %6 : vector<32x32xf32> to vector<32x32xbf16>
    %c16 = arith.constant 16 : index
    %c0_10 = arith.constant 0 : index
    %8 = vector.load %arg14[%c16, %c0_10] : memref<48x32xbf16, #tpu.memory_space<vmem>>, vector<32x32xbf16>
    tpu.vector_store %arg14[%c16, %c0_10], %7 {strides = array<i32>} : memref<48x32xbf16, #tpu.memory_space<vmem>>, vector<32x32xbf16>,
    %c0_11 = arith.constant 0 : index
    %c0_12 = arith.constant 0 : index
    %9 = vector.load %arg0[%c0_11, %c0_12] : memref<16x48xbf16, #tpu.memory_space<vmem>>, vector<16x48xbf16>
    %c0_13 = arith.constant 0 : index
    %c0_14 = arith.constant 0 : index
    %10 = vector.load %arg14[%c0_13, %c0_14] : memref<48x32xbf16, #tpu.memory_space<vmem>>, vector<48x32xbf16>
    %cst = arith.constant dense<0.000000e+00> : vector<16x32xf32>
    %11 = tpu.matmul %9, %10, %cst {dimension_numbers = #tpu.dot_dimension_numbers<[1], [0], [0], [1], [0, 0, 1, 1], [], []>} : vector<16x48xbf16>, vector<48x32xbf16>, vector<16x32xf32> -> vector<16x32xf32>
    %c0_15 = arith.constant 0 : index
    %c0_16 = arith.constant 0 : index
    %c0_17 = arith.constant 0 : index
    %12 = vector.load %arg4[%c0_15, %c0_16, %c0_17] : memref<2x32x64xf32, #tpu.memory_space<vmem>>, vector<1x32x64xf32>
    %13 = vector.shape_cast %12 : vector<1x32x64xf32> to vector<32x64xf32>
    %cst_18 = arith.constant dense<0.000000e+00> : vector<16x64xf32>
    %14 = tpu.matmul %11, %13, %cst_18 {dimension_numbers = #tpu.dot_dimension_numbers<[1], [0], [0], [1], [0, 0, 1, 1], [], []>} : vector<16x32xf32>, vector<32x64xf32>, vector<16x64xf32> -> vector<16x64xf32>
    %c0_19 = arith.constant 0 : index
    %c0_20 = arith.constant 0 : index
    %c0_21 = arith.constant 0 : index
    %15 = vector.load %arg5[%c0_19, %c0_20, %c0_21] : memref<2x1x64xf32, #tpu.memory_space<vmem>>, vector<1x1x64xf32>
    %16 = vector.shape_cast %15 : vector<1x1x64xf32> to vector<1x64xf32>
    %17 = vector.broadcast %16 : vector<1x64xf32> to vector<16x64xf32>
    %18 = arith.addf %14, %17 : vector<16x64xf32>
    %cst_22 = arith.constant 0.000000e+00 : f32
    %19 = vector.broadcast %cst_22 : f32 to vector<16x64xf32>
    %20 = arith.maximumf %18, %19 : vector<16x64xf32>
    %c0_23 = arith.constant 0 : index
    %c0_24 = arith.constant 0 : index
    %c0_25 = arith.constant 0 : index
    %21 = vector.load %arg6[%c0_23, %c0_24, %c0_25] : memref<2x64x32xf32, #tpu.memory_space<vmem>>, vector<1x64x32xf32>
    %22 = vector.shape_cast %21 : vector<1x64x32xf32> to vector<64x32xf32>
    %cst_26 = arith.constant dense<0.000000e+00> : vector<16x32xf32>
    %23 = tpu.matmul %20, %22, %cst_26 {dimension_numbers = #tpu.dot_dimension_numbers<[1], [0], [0], [1], [0, 0, 1, 1], [], []>} : vector<16x64xf32>, vector<64x32xf32>, vector<16x32xf32> -> vector<16x32xf32>
    %c0_27 = arith.constant 0 : index
    %c0_28 = arith.constant 0 : index
    %c0_29 = arith.constant 0 : index
    %24 = vector.load %arg7[%c0_27, %c0_28, %c0_29] : memref<2x1x32xf32, #tpu.memory_space<vmem>>, vector<1x1x32xf32>
    %25 = vector.shape_cast %24 : vector<1x1x32xf32> to vector<1x32xf32>
    %26 = vector.broadcast %25 : vector<1x32xf32> to vector<16x32xf32>
    %27 = arith.addf %23, %26 : vector<16x32xf32>
    %cst_30 = arith.constant 0.000000e+00 : f32
    %28 = vector.broadcast %cst_30 : f32 to vector<16x32xf32>
    %29 = arith.maximumf %27, %28 : vector<16x32xf32>
    %c0_31 = arith.constant 0 : index
    %c0_32 = arith.constant 0 : index
    %30 = vector.load %arg15[%c0_31, %c0_32] : memref<16x32xf32, #tpu.memory_space<vmem>>, vector<16x32xf32>
    tpu.vector_store %arg15[%c0_31, %c0_32], %29 {strides = array<i32>} : memref<16x32xf32, #tpu.memory_space<vmem>>, vector<16x32xf32>,
    %c0_33 = arith.constant 0 : index
    %c0_34 = arith.constant 0 : index
    %31 = vector.load %arg15[%c0_33, %c0_34] : memref<16x32xf32, #tpu.memory_space<vmem>>, vector<16x32xf32>
    %32 = arith.truncf %31 : vector<16x32xf32> to vector<16x32xbf16>
    %c0_35 = arith.constant 0 : index
    %c0_36 = arith.constant 0 : index
    %33 = vector.load %arg14[%c0_35, %c0_36] : memref<48x32xbf16, #tpu.memory_space<vmem>>, vector<16x32xbf16>
    tpu.vector_store %arg14[%c0_35, %c0_36], %32 {strides = array<i32>} : memref<48x32xbf16, #tpu.memory_space<vmem>>, vector<16x32xbf16>,
    %c1 = arith.constant 1 : index
    %c0_37 = arith.constant 0 : index
    %c0_38 = arith.constant 0 : index
    %34 = vector.load %arg3[%c1, %c0_37, %c0_38] : memref<2x32x32xf32, #tpu.memory_space<vmem>>, vector<1x32x32xf32>
    %35 = vector.shape_cast %34 : vector<1x32x32xf32> to vector<32x32xf32>
    %36 = arith.truncf %35 : vector<32x32xf32> to vector<32x32xbf16>
    %c16_39 = arith.constant 16 : index
    %c0_40 = arith.constant 0 : index
    %37 = vector.load %arg14[%c16_39, %c0_40] : memref<48x32xbf16, #tpu.memory_space<vmem>>, vector<32x32xbf16>
    tpu.vector_store %arg14[%c16_39, %c0_40], %36 {strides = array<i32>} : memref<48x32xbf16, #tpu.memory_space<vmem>>, vector<32x32xbf16>,
    %c0_41 = arith.constant 0 : index
    %c0_42 = arith.constant 0 : index
    %38 = vector.load %arg0[%c0_41, %c0_42] : memref<16x48xbf16, #tpu.memory_space<vmem>>, vector<16x48xbf16>
    %c0_43 = arith.constant 0 : index
    %c0_44 = arith.constant 0 : index
    %39 = vector.load %arg14[%c0_43, %c0_44] : memref<48x32xbf16, #tpu.memory_space<vmem>>, vector<48x32xbf16>
    %cst_45 = arith.constant dense<0.000000e+00> : vector<16x32xf32>
    %40 = tpu.matmul %38, %39, %cst_45 {dimension_numbers = #tpu.dot_dimension_numbers<[1], [0], [0], [1], [0, 0, 1, 1], [], []>} : vector<16x48xbf16>, vector<48x32xbf16>, vector<16x32xf32> -> vector<16x32xf32>
    %c1_46 = arith.constant 1 : index
    %c0_47 = arith.constant 0 : index
    %c0_48 = arith.constant 0 : index
    %41 = vector.load %arg4[%c1_46, %c0_47, %c0_48] : memref<2x32x64xf32, #tpu.memory_space<vmem>>, vector<1x32x64xf32>
    %42 = vector.shape_cast %41 : vector<1x32x64xf32> to vector<32x64xf32>
    %cst_49 = arith.constant dense<0.000000e+00> : vector<16x64xf32>
    %43 = tpu.matmul %40, %42, %cst_49 {dimension_numbers = #tpu.dot_dimension_numbers<[1], [0], [0], [1], [0, 0, 1, 1], [], []>} : vector<16x32xf32>, vector<32x64xf32>, vector<16x64xf32> -> vector<16x64xf32>
    %c1_50 = arith.constant 1 : index
    %c0_51 = arith.constant 0 : index
    %c0_52 = arith.constant 0 : index
    %44 = vector.load %arg5[%c1_50, %c0_51, %c0_52] : memref<2x1x64xf32, #tpu.memory_space<vmem>>, vector<1x1x64xf32>
    %45 = vector.shape_cast %44 : vector<1x1x64xf32> to vector<1x64xf32>
    %46 = vector.broadcast %45 : vector<1x64xf32> to vector<16x64xf32>
    %47 = arith.addf %43, %46 : vector<16x64xf32>
    %cst_53 = arith.constant 0.000000e+00 : f32
    %48 = vector.broadcast %cst_53 : f32 to vector<16x64xf32>
    %49 = arith.maximumf %47, %48 : vector<16x64xf32>
    %c1_54 = arith.constant 1 : index
    %c0_55 = arith.constant 0 : index
    %c0_56 = arith.constant 0 : index
    %50 = vector.load %arg6[%c1_54, %c0_55, %c0_56] : memref<2x64x32xf32, #tpu.memory_space<vmem>>, vector<1x64x32xf32>
    %51 = vector.shape_cast %50 : vector<1x64x32xf32> to vector<64x32xf32>
    %cst_57 = arith.constant dense<0.000000e+00> : vector<16x32xf32>
    %52 = tpu.matmul %49, %51, %cst_57 {dimension_numbers = #tpu.dot_dimension_numbers<[1], [0], [0], [1], [0, 0, 1, 1], [], []>} : vector<16x64xf32>, vector<64x32xf32>, vector<16x32xf32> -> vector<16x32xf32>
    %c1_58 = arith.constant 1 : index
    %c0_59 = arith.constant 0 : index
    %c0_60 = arith.constant 0 : index
    %53 = vector.load %arg7[%c1_58, %c0_59, %c0_60] : memref<2x1x32xf32, #tpu.memory_space<vmem>>, vector<1x1x32xf32>
    %54 = vector.shape_cast %53 : vector<1x1x32xf32> to vector<1x32xf32>
    %55 = vector.broadcast %54 : vector<1x32xf32> to vector<16x32xf32>
    %56 = arith.addf %52, %55 : vector<16x32xf32>
    %c0_61 = arith.constant 0 : index
    %c0_62 = arith.constant 0 : index
    %57 = vector.load %arg15[%c0_61, %c0_62] : memref<16x32xf32, #tpu.memory_space<vmem>>, vector<16x32xf32>
    tpu.vector_store %arg15[%c0_61, %c0_62], %56 {strides = array<i32>} : memref<16x32xf32, #tpu.memory_space<vmem>>, vector<16x32xf32>,
    %c0_63 = arith.constant 0 : index
    %c0_64 = arith.constant 0 : index
    %58 = vector.load %arg8[%c0_63, %c0_64] : memref<16x256xbf16, #tpu.memory_space<vmem>>, vector<16x256xbf16>
    %c0_65 = arith.constant 0 : index
    %c0_66 = arith.constant 0 : index
    %59 = vector.load %arg9[%c0_65, %c0_66] : memref<256x32xbf16, #tpu.memory_space<vmem>>, vector<256x32xbf16>
    %cst_67 = arith.constant dense<0.000000e+00> : vector<16x32xf32>
    %60 = tpu.matmul %58, %59, %cst_67 {dimension_numbers = #tpu.dot_dimension_numbers<[1], [0], [0], [1], [0, 0, 1, 1], [], []>} : vector<16x256xbf16>, vector<256x32xbf16>, vector<16x32xf32> -> vector<16x32xf32>
    %c0_68 = arith.constant 0 : index
    %c0_69 = arith.constant 0 : index
    %61 = vector.load %arg10[%c0_68, %c0_69] : memref<1x32xf32, #tpu.memory_space<vmem>>, vector<1x32xf32>
    %62 = vector.broadcast %61 : vector<1x32xf32> to vector<16x32xf32>
    %63 = arith.addf %60, %62 : vector<16x32xf32>
    %c0_70 = arith.constant 0 : index
    %c0_71 = arith.constant 0 : index
    %64 = vector.load %arg15[%c0_70, %c0_71] : memref<16x32xf32, #tpu.memory_space<vmem>>, vector<16x32xf32>
    %65 = arith.addf %64, %63 : vector<16x32xf32>
    %c0_72 = arith.constant 0 : index
    %c0_73 = arith.constant 0 : index
    %66 = vector.load %arg1[%c0_72, %c0_73] : memref<2x16xbf16, #tpu.memory_space<vmem>>, vector<2x16xbf16>
    %67 = arith.truncf %65 : vector<16x32xf32> to vector<16x32xbf16>
    %cst_74 = arith.constant dense<0.000000e+00> : vector<2x32xf32>
    %68 = tpu.matmul %66, %67, %cst_74 {dimension_numbers = #tpu.dot_dimension_numbers<[1], [0], [0], [1], [0, 0, 1, 1], [], []>} : vector<2x16xbf16>, vector<16x32xbf16>, vector<2x32xf32> -> vector<2x32xf32>
    %c0_75 = arith.constant 0 : index
    %c0_76 = arith.constant 0 : index
    %69 = vector.load %arg11[%c0_75, %c0_76] : memref<32x128xf32, #tpu.memory_space<vmem>>, vector<32x128xf32>
    %cst_77 = arith.constant dense<0.000000e+00> : vector<2x128xf32>
    %70 = tpu.matmul %68, %69, %cst_77 {dimension_numbers = #tpu.dot_dimension_numbers<[1], [0], [0], [1], [0, 0, 1, 1], [], []>} : vector<2x32xf32>, vector<32x128xf32>, vector<2x128xf32> -> vector<2x128xf32>
    %c0_78 = arith.constant 0 : index
    %c0_79 = arith.constant 0 : index
    %71 = vector.load %arg12[%c0_78, %c0_79] : memref<1x128xf32, #tpu.memory_space<vmem>>, vector<1x128xf32>
    %72 = vector.broadcast %71 : vector<1x128xf32> to vector<2x128xf32>
    %73 = arith.addf %70, %72 : vector<2x128xf32>
    %c0_80 = arith.constant 0 : index
    %c0_81 = arith.constant 0 : index
    %74 = vector.load %arg13[%c0_80, %c0_81] : memref<2x128xf32, #tpu.memory_space<vmem>>, vector<2x128xf32>
    tpu.vector_store %arg13[%c0_80, %c0_81], %73 {strides = array<i32>} : memref<2x128xf32, #tpu.memory_space<vmem>>, vector<2x128xf32>,
    return
  }
}

</mosaic_0001>

<llo_original>
// kernel: tpu_custom_call.1
$region0: #{tpu_custom_call.1}
  #allocation0 [shape = 'u32[]', space=smem, size = 0x4, offset = 0x4, fixed_abs, tag = 'smem constant byte address 0x4 - core index']
  #allocation1 [shape = 'u32[72,128]{1,0:T(1,128)}', space=vmem, size = 0x9000, scoped, tag = 'internal scratch']
  #allocation2 [shape = 'bf16[48,32]{1,0:T(8,128)(2,1)}', space=vmem, size = 0x3000, scoped, tag = 'scratch operand']
  #allocation3 [shape = 'f32[16,32]{1,0:T(8,128)}', space=vmem, size = 0x2000, scoped, tag = 'scratch operand']
  %s0 = inlined_call_operand.vmem [shape: bf16[16,48], index: 0, kind: input, shape index: {}]
  %s1 = inlined_call_operand.vmem [shape: bf16[2,16], index: 1, kind: input, shape index: {}]
  %s2 = inlined_call_operand.vmem [shape: f32[16,32], index: 2, kind: input, shape index: {}]
  %s3 = inlined_call_operand.vmem [shape: f32[2,32,32], index: 3, kind: input, shape index: {}]
  %s4 = inlined_call_operand.vmem [shape: f32[2,32,64], index: 4, kind: input, shape index: {}]
  %s5 = inlined_call_operand.vmem [shape: f32[2,1,64], index: 5, kind: input, shape index: {}]
  %s6 = inlined_call_operand.vmem [shape: f32[2,64,32], index: 6, kind: input, shape index: {}]
  %s7 = inlined_call_operand.vmem [shape: f32[2,1,32], index: 7, kind: input, shape index: {}]
  %s8 = inlined_call_operand.vmem [shape: bf16[16,256], index: 8, kind: input, shape index: {}]
  %s9 = inlined_call_operand.vmem [shape: bf16[256,32], index: 9, kind: input, shape index: {}]
  %s10 = inlined_call_operand.vmem [shape: f32[1,32], index: 10, kind: input, shape index: {}]
  %s11 = inlined_call_operand.vmem [shape: f32[32,128], index: 11, kind: input, shape index: {}]
  %s12 = inlined_call_operand.vmem [shape: f32[1,128], index: 12, kind: input, shape index: {}]
  %s13 = inlined_call_operand.hbm [shape: f32[2,128], index: 13, kind: output, shape index: {}]
  %s14 = sld [smem:[#allocation0]]
  $region62: #{tpu_custom_call.1} parent=0
    _
  %s16 = ssub.s32 1, %s14
  %s17 = scalar_select 0, %s16, %s14
  $region1: #{tpu_custom_call.1} parent=0
    #allocation4 [shape = 'u8[1024]{0}', space=vmem, size = 0x400, scoped, tag = 'output window, operand 0, single buffered']
    #allocation5 [shape = 's32[1]{0}', space=sflag, size = 0x4, scoped, tag = 'scoped memory for tpu_custom_call.1']
    %18 = vsyncpa [#allocation5], 0
    // Predicated region
    $region2: #{tpu_custom_call.1} parent=1 // pred_check
      _
    $region3: #{tpu_custom_call.1} parent=1 // pred_check_branch
      %20 = sbr.rel (0) target = $region5
    $region4: #{tpu_custom_call.1} parent=1 // pred_region
      _
    $region5: #{tpu_custom_call.1} parent=1 // pred_fallthru
      _
    // Predicated region
    $region6: #{tpu_custom_call.1} parent=1 // pred_check
      _
    $region7: #{tpu_custom_call.1} parent=1 // pred_check_branch
      %22 = sbr.rel (0) target = $region9
    $region8: #{tpu_custom_call.1} parent=1 // pred_region
      _
    $region9: #{tpu_custom_call.1} parent=1 // pred_fallthru
      _
    // Predicated region
    $region10: #{tpu_custom_call.1} parent=1 // pred_check
      _
    $region11: #{tpu_custom_call.1} parent=1 // pred_check_branch
      %24 = sbr.rel (0) target = $region13
    $region12: #{tpu_custom_call.1} parent=1 // pred_region
      _
    $region13: #{tpu_custom_call.1} parent=1 // pred_fallthru
      _
    // Predicated region
    $region14: #{tpu_custom_call.1} parent=1 // pred_check
      _
    $region15: #{tpu_custom_call.1} parent=1 // pred_check_branch
      %26 = sbr.rel (0) target = $region17
    $region16: #{tpu_custom_call.1} parent=1 // pred_region
      _
    $region17: #{tpu_custom_call.1} parent=1 // pred_fallthru
      _
    // Predicated region
    $region18: #{tpu_custom_call.1} parent=1 // pred_check
      _
    $region19: #{tpu_custom_call.1} parent=1 // pred_check_branch
      %28 = sbr.rel (0) target = $region21
    $region20: #{tpu_custom_call.1} parent=1 // pred_region
      _
    $region21: #{tpu_custom_call.1} parent=1 // pred_fallthru
      _
    // Predicated region
    $region22: #{tpu_custom_call.1} parent=1 // pred_check
      _
    $region23: #{tpu_custom_call.1} parent=1 // pred_check_branch
      %30 = sbr.rel (0) target = $region25
    $region24: #{tpu_custom_call.1} parent=1 // pred_region
      _
    $region25: #{tpu_custom_call.1} parent=1 // pred_fallthru
      _
    // Predicated region
    $region26: #{tpu_custom_call.1} parent=1 // pred_check
      _
    $region27: #{tpu_custom_call.1} parent=1 // pred_check_branch
      %32 = sbr.rel (0) target = $region29
    $region28: #{tpu_custom_call.1} parent=1 // pred_region
      _
    $region29: #{tpu_custom_call.1} parent=1 // pred_fallthru
      _
    // Predicated region
    $region30: #{tpu_custom_call.1} parent=1 // pred_check
      _
    $region31: #{tpu_custom_call.1} parent=1 // pred_check_branch
      %34 = sbr.rel (0) target = $region33
    $region32: #{tpu_custom_call.1} parent=1 // pred_region
      _
    $region33: #{tpu_custom_call.1} parent=1 // pred_fallthru
      _
    // Predicated region
    $region34: #{tpu_custom_call.1} parent=1 // pred_check
      _
    $region35: #{tpu_custom_call.1} parent=1 // pred_check_branch
      %36 = sbr.rel (0) target = $region37
    $region36: #{tpu_custom_call.1} parent=1 // pred_region
      _
    $region37: #{tpu_custom_call.1} parent=1 // pred_fallthru
      _
    // Predicated region
    $region38: #{tpu_custom_call.1} parent=1 // pred_check
      _
    $region39: #{tpu_custom_call.1} parent=1 // pred_check_branch
      %38 = sbr.rel (0) target = $region41
    $region40: #{tpu_custom_call.1} parent=1 // pred_region
      _
    $region41: #{tpu_custom_call.1} parent=1 // pred_fallthru
      _
    // Predicated region
    $region42: #{tpu_custom_call.1} parent=1 // pred_check
      _
    $region43: #{tpu_custom_call.1} parent=1 // pred_check_branch
      %40 = sbr.rel (0) target = $region45
    $region44: #{tpu_custom_call.1} parent=1 // pred_region
      _
    $region45: #{tpu_custom_call.1} parent=1 // pred_fallthru
      _
    // Predicated region
    $region46: #{tpu_custom_call.1} parent=1 // pred_check
      _
    $region47: #{tpu_custom_call.1} parent=1 // pred_check_branch
      %42 = sbr.rel (0) target = $region49
    $region48: #{tpu_custom_call.1} parent=1 // pred_region
      _
    $region49: #{tpu_custom_call.1} parent=1 // pred_fallthru
      _
    // Predicated region
    $region50: #{tpu_custom_call.1} parent=1 // pred_check
      _
    $region51: #{tpu_custom_call.1} parent=1 // pred_check_branch
      %44 = sbr.rel (0) target = $region53
    $region52: #{tpu_custom_call.1} parent=1 // pred_region
      _
    $region53: #{tpu_custom_call.1} parent=1 // pred_fallthru
      _
    %v46 = vld [vmem:[%s2] sm:$0xff]
    %v47 = vld [vmem:[%s2 + $0x8] sm:$0xff]
    %vm48 = vcmask 261120
    %49 = vst.msk [vmem:[#allocation3] sm:$0xff] %vm48, %v46
    %50 = vst.msk [vmem:[#allocation3 + $0x8] sm:$0xff] %vm48, %v47
    %v51 = vld [vmem:[#allocation3] sm:$0xff]
    %v52 = vld [vmem:[#allocation3 + $0x8] sm:$0xff]
    %v53 = vpack.c.bf16 %v51, %v51
    %v54 = vpack.c.bf16 %v52, %v52
    %vm55 = vcmask 257024
    %56 = vst.msk [vmem:[#allocation2] sm:$0xf] %vm55, %v53
    %57 = vst.msk [vmem:[#allocation2 + $0x4] sm:$0xf] %vm55, %v54
    %v58 = vld [vmem:[%s3] sm:$0xff]
    %v59 = vld [vmem:[%s3 + $0x8] sm:$0xff]
    %v60 = vld [vmem:[%s3 + $0x10] sm:$0xff]
    %v61 = vld [vmem:[%s3 + $0x18] sm:$0xff]
    %v62 = vpack.c.bf16 %v58, %v58
    %v63 = vpack.c.bf16 %v59, %v59
    %v64 = vpack.c.bf16 %v60, %v60
    %v65 = vpack.c.bf16 %v61, %v61
    %66 = vst.msk [vmem:[#allocation2 + $0x8] sm:$0xf] %vm55, %v62
    %67 = vst.msk [vmem:[#allocation2 + $0xc] sm:$0xf] %vm55, %v63
    %68 = vst.msk [vmem:[#allocation2 + $0x10] sm:$0xf] %vm55, %v64
    %69 = vst.msk [vmem:[#allocation2 + $0x14] sm:$0xf] %vm55, %v65
    %v70 = vld [vmem:[%s0] sm:$0xf]
    %v71 = vld [vmem:[%s0 + $0x4] sm:$0xf]
    %v72 = vld [vmem:[#allocation2] sm:$0xf]
    %v73 = vld [vmem:[#allocation2 + $0x4] sm:$0xf]
    %v74 = vld [vmem:[#allocation2 + $0x8] sm:$0xf]
    %v75 = vld [vmem:[#allocation2 + $0xc] sm:$0xf]
    %v76 = vld [vmem:[#allocation2 + $0x10] sm:$0xf]
    %v77 = vld [vmem:[#allocation2 + $0x14] sm:$0xf]
    %v80 = vunpack.c.l.b16 %v70
    %v81 = vunpack.c.l.b16 %v71
    %v82 = vpack.c.b16 %v81, %v80
    %v89 = vunpack.c.l.b16 %v72
    %v90 = vunpack.c.l.b16 %v73
    %v91 = vunpack.c.l.b16 %v74
    %v92 = vunpack.c.l.b16 %v75
    %v93 = vunpack.c.l.b16 %v76
    %v94 = vunpack.c.l.b16 %v77
    %v95 = vpack.c.b16 %v90, %v89
    %v96 = vpack.c.b16 %v92, %v91
    %v97 = vpack.c.b16 %v94, %v93
    %vm101 = vcmask 392192
    %v103 = vsel %vm101, %v82, 0
    %105 = vmatpush.bf16.msra.mxu0 0
    %106 = vmatpush.bf16.msra.mxu0 0
    %107 = vmatpush.bf16.msra.mxu0 0
    %108 = vmatpush.bf16.msra.mxu0 0
    %109 = vmatpush.bf16.msra.mxu0 0
    %110 = vmatpush.bf16.msra.mxu0 %v97
    %111 = vmatpush.bf16.msra.mxu0 %v96
    %112 = vmatpush.bf16.msra.mxu0 %v95
    %113 = vmatmul.bf16.gmra.mxu0 %v103
    %v114 = vpop.f32.mrf.mxu0
    %v115 = vadd.f32 0.0, %v114
    %v116 = vpop.f32.mrf.mxu0
    %v117 = vadd.f32 0.0, %v116
    %118 = vdwg.mxu0
    %v119 = vld [vmem:[%s4] sm:$0xff]
    %v120 = vld [vmem:[%s4 + $0x8] sm:$0xff]
    %v121 = vld [vmem:[%s4 + $0x10] sm:$0xff]
    %v122 = vld [vmem:[%s4 + $0x18] sm:$0xff]
    %v123 = vld [vmem:[%s5] sm:$0x1]
    %v125 = vperm.slane %v123, 0
    %v128 = vsel %vm48, %v115, 0
    %v131 = vsel %vm48, %v117, 0
    %133 = vmatpush.msra.mxu0 0.0
    %134 = vmatpush.msra.mxu0 0.0
    %135 = vmatpush.msra.mxu0 0.0
    %136 = vmatpush.msra.mxu0 0.0
    %137 = vmatpush.msra.mxu0 0.0
    %138 = vmatpush.msra.mxu0 0.0
    %139 = vmatpush.msra.mxu0 0.0
    %140 = vmatpush.msra.mxu0 0.0
    %141 = vmatpush.msra.mxu0 0.0
    %142 = vmatpush.msra.mxu0 0.0
    %143 = vmatpush.msra.mxu0 0.0
    %144 = vmatpush.msra.mxu0 0.0
    %145 = vmatpush.msra.mxu0 %v122
    %146 = vmatpush.msra.mxu0 %v121
    %147 = vmatpush.msra.mxu0 %v120
    %148 = vmatpush.msra.mxu0 %v119
    %149 = vmatmul.f32.gmra.mxu0 %v128
    %v150 = vpop.f32.mrf.mxu0
    %v151 = vadd.f32 %v125, %v150
    %152 = vmatmul.f32.gmra.mxu0 %v131
    %v153 = vpop.f32.mrf.mxu0
    %v154 = vadd.f32 %v125, %v153
    %155 = vdwg.mxu0
    %v156 = vmax.f32 %v151, 0.0
    %v157 = vmax.f32 %v154, 0.0
    %v158 = vld [vmem:[%s6] sm:$0xff]
    %v159 = vld [vmem:[%s6 + $0x8] sm:$0xff]
    %v160 = vld [vmem:[%s6 + $0x10] sm:$0xff]
    %v161 = vld [vmem:[%s6 + $0x18] sm:$0xff]
    %v162 = vld [vmem:[%s6 + $0x20] sm:$0xff]
    %v163 = vld [vmem:[%s6 + $0x28] sm:$0xff]
    %v164 = vld [vmem:[%s6 + $0x30] sm:$0xff]
    %v165 = vld [vmem:[%s6 + $0x38] sm:$0xff]
    %v166 = vld [vmem:[%s7] sm:$0x1]
    %v168 = vperm.slane %v166, 0
    %vm170 = vcmask 523264
    %v172 = vsel %vm170, %v156, 0
    %v175 = vsel %vm170, %v157, 0
    %177 = vmatpush.msra.mxu0 0.0
    %178 = vmatpush.msra.mxu0 0.0
    %179 = vmatpush.msra.mxu0 0.0
    %180 = vmatpush.msra.mxu0 0.0
    %181 = vmatpush.msra.mxu0 0.0
    %182 = vmatpush.msra.mxu0 0.0
    %183 = vmatpush.msra.mxu0 0.0
    %184 = vmatpush.msra.mxu0 0.0
    %185 = vmatpush.msra.mxu0 %v165
    %186 = vmatpush.msra.mxu0 %v164
    %187 = vmatpush.msra.mxu0 %v163
    %188 = vmatpush.msra.mxu0 %v162
    %189 = vmatpush.msra.mxu0 %v161
    %190 = vmatpush.msra.mxu0 %v160
    %191 = vmatpush.msra.mxu0 %v159
    %192 = vmatpush.msra.mxu0 %v158
    %193 = vmatmul.f32.gmra.mxu0 %v172
    %v194 = vpop.f32.mrf.mxu0
    %v195 = vadd.f32 %v168, %v194
    %196 = vmatmul.f32.gmra.mxu0 %v175
    %v197 = vpop.f32.mrf.mxu0
    %v198 = vadd.f32 %v168, %v197
    %199 = vdwg.mxu0
    %v200 = vmax.f32 %v195, 0.0
    %v201 = vmax.f32 %v198, 0.0
    %202 = vst.msk [vmem:[#allocation3] sm:$0xff] %vm48, %v200
    %203 = vst.msk [vmem:[#allocation3 + $0x8] sm:$0xff] %vm48, %v201
    %v204 = vld [vmem:[#allocation3] sm:$0xff]
    %v205 = vld [vmem:[#allocation3 + $0x8] sm:$0xff]
    %v206 = vpack.c.bf16 %v204, %v204
    %v207 = vpack.c.bf16 %v205, %v205
    %208 = vst.msk [vmem:[#allocation2] sm:$0xf] %vm55, %v206
    %209 = vst.msk [vmem:[#allocation2 + $0x4] sm:$0xf] %vm55, %v207
    %s210 = scalar_lea.vmem %s3, 32
    %v211 = vld [vmem:[%s210] sm:$0xff]
    %v212 = vld [vmem:[%s210 + $0x8] sm:$0xff]
    %v213 = vld [vmem:[%s210 + $0x10] sm:$0xff]
    %v214 = vld [vmem:[%s210 + $0x18] sm:$0xff]
    %v215 = vpack.c.bf16 %v211, %v211
    %v216 = vpack.c.bf16 %v212, %v212
    %v217 = vpack.c.bf16 %v213, %v213
    %v218 = vpack.c.bf16 %v214, %v214
    %219 = vst.msk [vmem:[#allocation2 + $0x8] sm:$0xf] %vm55, %v215
    %220 = vst.msk [vmem:[#allocation2 + $0xc] sm:$0xf] %vm55, %v216
    %221 = vst.msk [vmem:[#allocation2 + $0x10] sm:$0xf] %vm55, %v217
    %222 = vst.msk [vmem:[#allocation2 + $0x14] sm:$0xf] %vm55, %v218
    %v223 = vld [vmem:[%s0] sm:$0xf]
    %v224 = vld [vmem:[%s0 + $0x4] sm:$0xf]
    %v225 = vld [vmem:[#allocation2] sm:$0xf]
    %v226 = vld [vmem:[#allocation2 + $0x4] sm:$0xf]
    %v227 = vld [vmem:[#allocation2 + $0x8] sm:$0xf]
    %v228 = vld [vmem:[#allocation2 + $0xc] sm:$0xf]
    %v229 = vld [vmem:[#allocation2 + $0x10] sm:$0xf]
    %v230 = vld [vmem:[#allocation2 + $0x14] sm:$0xf]
    %v233 = vunpack.c.l.b16 %v223
    %v234 = vunpack.c.l.b16 %v224
    %v235 = vpack.c.b16 %v234, %v233
    %v242 = vunpack.c.l.b16 %v225
    %v243 = vunpack.c.l.b16 %v226
    %v244 = vunpack.c.l.b16 %v227
    %v245 = vunpack.c.l.b16 %v228
    %v246 = vunpack.c.l.b16 %v229
    %v247 = vunpack.c.l.b16 %v230
    %v248 = vpack.c.b16 %v243, %v242
    %v249 = vpack.c.b16 %v245, %v244
    %v250 = vpack.c.b16 %v247, %v246
    %v255 = vsel %vm101, %v235, 0
    %257 = vmatpush.bf16.msra.mxu0 0
    %258 = vmatpush.bf16.msra.mxu0 0
    %259 = vmatpush.bf16.msra.mxu0 0
    %260 = vmatpush.bf16.msra.mxu0 0
    %261 = vmatpush.bf16.msra.mxu0 0
    %262 = vmatpush.bf16.msra.mxu0 %v250
    %263 = vmatpush.bf16.msra.mxu0 %v249
    %264 = vmatpush.bf16.msra.mxu0 %v248
    %265 = vmatmul.bf16.gmra.mxu0 %v255
    %v266 = vpop.f32.mrf.mxu0
    %v267 = vadd.f32 0.0, %v266
    %v268 = vpop.f32.mrf.mxu0
    %v269 = vadd.f32 0.0, %v268
    %270 = vdwg.mxu0
    %s271 = scalar_lea.vmem %s4, 32
    %v272 = vld [vmem:[%s271] sm:$0xff]
    %v273 = vld [vmem:[%s271 + $0x8] sm:$0xff]
    %v274 = vld [vmem:[%s271 + $0x10] sm:$0xff]
    %v275 = vld [vmem:[%s271 + $0x18] sm:$0xff]
    %s276 = scalar_lea.vmem %s5, 1
    %v277 = vld [vmem:[%s276] sm:$0x1]
    %v279 = vperm.slane %v277, 0
    %v282 = vsel %vm48, %v267, 0
    %v285 = vsel %vm48, %v269, 0
    %287 = vmatpush.msra.mxu0 0.0
    %288 = vmatpush.msra.mxu0 0.0
    %289 = vmatpush.msra.mxu0 0.0
    %290 = vmatpush.msra.mxu0 0.0
    %291 = vmatpush.msra.mxu0 0.0
    %292 = vmatpush.msra.mxu0 0.0
    %293 = vmatpush.msra.mxu0 0.0
    %294 = vmatpush.msra.mxu0 0.0
    %295 = vmatpush.msra.mxu0 0.0
    %296 = vmatpush.msra.mxu0 0.0
    %297 = vmatpush.msra.mxu0 0.0
    %298 = vmatpush.msra.mxu0 0.0
    %299 = vmatpush.msra.mxu0 %v275
    %300 = vmatpush.msra.mxu0 %v274
    %301 = vmatpush.msra.mxu0 %v273
    %302 = vmatpush.msra.mxu0 %v272
    %303 = vmatmul.f32.gmra.mxu0 %v282
    %v304 = vpop.f32.mrf.mxu0
    %v305 = vadd.f32 %v279, %v304
    %306 = vmatmul.f32.gmra.mxu0 %v285
    %v307 = vpop.f32.mrf.mxu0
    %v308 = vadd.f32 %v279, %v307
    %309 = vdwg.mxu0
    %v310 = vmax.f32 %v305, 0.0
    %v311 = vmax.f32 %v308, 0.0
    %s312 = scalar_lea.vmem %s6, 64
    %v313 = vld [vmem:[%s312] sm:$0xff]
    %v314 = vld [vmem:[%s312 + $0x8] sm:$0xff]
    %v315 = vld [vmem:[%s312 + $0x10] sm:$0xff]
    %v316 = vld [vmem:[%s312 + $0x18] sm:$0xff]
    %v317 = vld [vmem:[%s312 + $0x20] sm:$0xff]
    %v318 = vld [vmem:[%s312 + $0x28] sm:$0xff]
    %v319 = vld [vmem:[%s312 + $0x30] sm:$0xff]
    %v320 = vld [vmem:[%s312 + $0x38] sm:$0xff]
    %s321 = scalar_lea.vmem %s7, 1
    %v322 = vld [vmem:[%s321] sm:$0x1]
    %v324 = vperm.slane %v322, 0
    %v327 = vsel %vm170, %v310, 0
    %v330 = vsel %vm170, %v311, 0
    %332 = vmatpush.msra.mxu0 0.0
    %333 = vmatpush.msra.mxu0 0.0
    %334 = vmatpush.msra.mxu0 0.0
    %335 = vmatpush.msra.mxu0 0.0
    %336 = vmatpush.msra.mxu0 0.0
    %337 = vmatpush.msra.mxu0 0.0
    %338 = vmatpush.msra.mxu0 0.0
    %339 = vmatpush.msra.mxu0 0.0
    %340 = vmatpush.msra.mxu0 %v320
    %341 = vmatpush.msra.mxu0 %v319
    %342 = vmatpush.msra.mxu0 %v318
    %343 = vmatpush.msra.mxu0 %v317
    %344 = vmatpush.msra.mxu0 %v316
    %345 = vmatpush.msra.mxu0 %v315
    %346 = vmatpush.msra.mxu0 %v314
    %347 = vmatpush.msra.mxu0 %v313
    %348 = vmatmul.f32.gmra.mxu0 %v327
    %v349 = vpop.f32.mrf.mxu0
    %v350 = vadd.f32 %v324, %v349
    %351 = vmatmul.f32.gmra.mxu0 %v330
    %v352 = vpop.f32.mrf.mxu0
    %v353 = vadd.f32 %v324, %v352
    %354 = vdwg.mxu0
    %355 = vst.msk [vmem:[#allocation3] sm:$0xff] %vm48, %v350
    %356 = vst.msk [vmem:[#allocation3 + $0x8] sm:$0xff] %vm48, %v353
    %v357 = vld [vmem:[%s8] sm:$0xff]
    %v358 = vld [vmem:[%s8 + $0x8] sm:$0xff]
    %v359 = vld [vmem:[%s9] sm:$0xf]
    %v360 = vld [vmem:[%s9 + $0x4] sm:$0xf]
    %v361 = vld [vmem:[%s9 + $0x8] sm:$0xf]
    %v362 = vld [vmem:[%s9 + $0xc] sm:$0xf]
    %v363 = vld [vmem:[%s9 + $0x10] sm:$0xf]
    %v364 = vld [vmem:[%s9 + $0x14] sm:$0xf]
    %v365 = vld [vmem:[%s9 + $0x18] sm:$0xf]
    %v366 = vld [vmem:[%s9 + $0x1c] sm:$0xf]
    %v367 = vld [vmem:[%s9 + $0x20] sm:$0xf]
    %v368 = vld [vmem:[%s9 + $0x24] sm:$0xf]
    %v369 = vld [vmem:[%s9 + $0x28] sm:$0xf]
    %v370 = vld [vmem:[%s9 + $0x2c] sm:$0xf]
    %v371 = vld [vmem:[%s9 + $0x30] sm:$0xf]
    %v372 = vld [vmem:[%s9 + $0x34] sm:$0xf]
    %v373 = vld [vmem:[%s9 + $0x38] sm:$0xf]
    %v374 = vld [vmem:[%s9 + $0x3c] sm:$0xf]
    %v375 = vld [vmem:[%s9 + $0x40] sm:$0xf]
    %v376 = vld [vmem:[%s9 + $0x44] sm:$0xf]
    %v377 = vld [vmem:[%s9 + $0x48] sm:$0xf]
    %v378 = vld [vmem:[%s9 + $0x4c] sm:$0xf]
    %v379 = vld [vmem:[%s9 + $0x50] sm:$0xf]
    %v380 = vld [vmem:[%s9 + $0x54] sm:$0xf]
    %v381 = vld [vmem:[%s9 + $0x58] sm:$0xf]
    %v382 = vld [vmem:[%s9 + $0x5c] sm:$0xf]
    %v383 = vld [vmem:[%s9 + $0x60] sm:$0xf]
    %v384 = vld [vmem:[%s9 + $0x64] sm:$0xf]
    %v385 = vld [vmem:[%s9 + $0x68] sm:$0xf]
    %v386 = vld [vmem:[%s9 + $0x6c] sm:$0xf]
    %v387 = vld [vmem:[%s9 + $0x70] sm:$0xf]
    %v388 = vld [vmem:[%s9 + $0x74] sm:$0xf]
    %v389 = vld [vmem:[%s9 + $0x78] sm:$0xf]
    %v390 = vld [vmem:[%s9 + $0x7c] sm:$0xf]
    %v391 = vld [vmem:[%s10] sm:$0x1]
    %v393 = vperm.slane %v391, 0
    %v397 = vunpack.c.l.b16 %v357
    %v398 = vunpack.c.h.b16 %v357
    %v399 = vunpack.c.l.b16 %v358
    %v400 = vunpack.c.h.b16 %v358
    %v401 = vpack.c.b16 %v399, %v397
    %v402 = vpack.c.b16 %v400, %v398
    %v437 = vunpack.c.l.b16 %v359
    %v438 = vunpack.c.l.b16 %v360
    %v439 = vunpack.c.l.b16 %v361
    %v440 = vunpack.c.l.b16 %v362
    %v441 = vunpack.c.l.b16 %v363
    %v442 = vunpack.c.l.b16 %v364
    %v443 = vunpack.c.l.b16 %v365
    %v444 = vunpack.c.l.b16 %v366
    %v445 = vunpack.c.l.b16 %v367
    %v446 = vunpack.c.l.b16 %v368
    %v447 = vunpack.c.l.b16 %v369
    %v448 = vunpack.c.l.b16 %v370
    %v449 = vunpack.c.l.b16 %v371
    %v450 = vunpack.c.l.b16 %v372
    %v451 = vunpack.c.l.b16 %v373
    %v452 = vunpack.c.l.b16 %v374
    %v453 = vunpack.c.l.b16 %v375
    %v454 = vunpack.c.l.b16 %v376
    %v455 = vunpack.c.l.b16 %v377
    %v456 = vunpack.c.l.b16 %v378
    %v457 = vunpack.c.l.b16 %v379
    %v458 = vunpack.c.l.b16 %v380
    %v459 = vunpack.c.l.b16 %v381
    %v460 = vunpack.c.l.b16 %v382
    %v461 = vunpack.c.l.b16 %v383
    %v462 = vunpack.c.l.b16 %v384
    %v463 = vunpack.c.l.b16 %v385
    %v464 = vunpack.c.l.b16 %v386
    %v465 = vunpack.c.l.b16 %v387
    %v466 = vunpack.c.l.b16 %v388
    %v467 = vunpack.c.l.b16 %v389
    %v468 = vunpack.c.l.b16 %v390
    %v469 = vpack.c.b16 %v438, %v437
    %v470 = vpack.c.b16 %v440, %v439
    %v471 = vpack.c.b16 %v442, %v441
    %v472 = vpack.c.b16 %v444, %v443
    %v473 = vpack.c.b16 %v446, %v445
    %v474 = vpack.c.b16 %v448, %v447
    %v475 = vpack.c.b16 %v450, %v449
    %v476 = vpack.c.b16 %v452, %v451
    %v477 = vpack.c.b16 %v454, %v453
    %v478 = vpack.c.b16 %v456, %v455
    %v479 = vpack.c.b16 %v458, %v457
    %v480 = vpack.c.b16 %v460, %v459
    %v481 = vpack.c.b16 %v462, %v461
    %v482 = vpack.c.b16 %v464, %v463
    %v483 = vpack.c.b16 %v466, %v465
    %v484 = vpack.c.b16 %v468, %v467
    %501 = vmatpush.bf16.msra.mxu0 %v476
    %502 = vmatpush.bf16.msra.mxu0 %v475
    %503 = vmatpush.bf16.msra.mxu0 %v474
    %504 = vmatpush.bf16.msra.mxu0 %v473
    %505 = vmatpush.bf16.msra.mxu0 %v472
    %506 = vmatpush.bf16.msra.mxu0 %v471
    %507 = vmatpush.bf16.msra.mxu0 %v470
    %508 = vmatpush.bf16.msra.mxu0 %v469
    %509 = vmatmul.bf16.gmra.mxu0 %v401
    %v510 = vpop.f32.mrf.mxu0
    %v511 = vadd.f32 %v393, %v510
    %v512 = vpop.f32.mrf.mxu0
    %v513 = vadd.f32 %v393, %v512
    %514 = vdwg.mxu0
    %515 = vmatpush.bf16.msra.mxu0 %v484
    %516 = vmatpush.bf16.msra.mxu0 %v483
    %517 = vmatpush.bf16.msra.mxu0 %v482
    %518 = vmatpush.bf16.msra.mxu0 %v481
    %519 = vmatpush.bf16.msra.mxu0 %v480
    %520 = vmatpush.bf16.msra.mxu0 %v479
    %521 = vmatpush.bf16.msra.mxu0 %v478
    %522 = vmatpush.bf16.msra.mxu0 %v477
    %523 = vmatmul.bf16.gmra.mxu0 %v402
    %v524 = vpop.f32.mrf.mxu0
    %v525 = vadd.f32 %v511, %v524
    %v526 = vpop.f32.mrf.mxu0
    %v527 = vadd.f32 %v513, %v526
    %528 = vdwg.mxu0
    %v529 = vld [vmem:[#allocation3] sm:$0xff]
    %v530 = vld [vmem:[#allocation3 + $0x8] sm:$0xff]
    %v531 = vadd.f32 %v529, %v525
    %v532 = vadd.f32 %v530, %v527
    %v533 = vld [vmem:[%s1] sm:$0x1]
    %v534 = vpack.c.bf16 %v532, %v531
    %vm535 = vcmask 130048
    %v537 = vsel %vm535, %v533, 0
    %539 = vmatpush.bf16.msra.mxu0 0
    %540 = vmatpush.bf16.msra.mxu0 0
    %541 = vmatpush.bf16.msra.mxu0 0
    %542 = vmatpush.bf16.msra.mxu0 0
    %543 = vmatpush.bf16.msra.mxu0 0
    %544 = vmatpush.bf16.msra.mxu0 0
    %545 = vmatpush.bf16.msra.mxu0 0
    %546 = vmatpush.bf16.msra.mxu0 %v534
    %547 = vmatmul.bf16.gmra.mxu0 %v537
    %v548 = vpop.f32.mrf.mxu0
    %v549 = vadd.f32 0.0, %v548
    %v550 = vpop.f32.mrf.mxu0
    %551 = vdwg.mxu0
    %v552 = vld [vmem:[%s11] sm:$0xff]
    %v553 = vld [vmem:[%s11 + $0x8] sm:$0xff]
    %v554 = vld [vmem:[%s11 + $0x10] sm:$0xff]
    %v555 = vld [vmem:[%s11 + $0x18] sm:$0xff]
    %v556 = vld [vmem:[%s12] sm:$0x1]
    %v558 = vperm.slane %v556, 0
    %v561 = vsel %vm48, %v549, 0
    %563 = vmatpush.msra.mxu0 0.0
    %564 = vmatpush.msra.mxu0 0.0
    %565 = vmatpush.msra.mxu0 0.0
    %566 = vmatpush.msra.mxu0 0.0
    %567 = vmatpush.msra.mxu0 0.0
    %568 = vmatpush.msra.mxu0 0.0
    %569 = vmatpush.msra.mxu0 0.0
    %570 = vmatpush.msra.mxu0 0.0
    %571 = vmatpush.msra.mxu0 0.0
    %572 = vmatpush.msra.mxu0 0.0
    %573 = vmatpush.msra.mxu0 0.0
    %574 = vmatpush.msra.mxu0 0.0
    %575 = vmatpush.msra.mxu0 %v555
    %576 = vmatpush.msra.mxu0 %v554
    %577 = vmatpush.msra.mxu0 %v553
    %578 = vmatpush.msra.mxu0 %v552
    %579 = vmatmul.f32.gmra.mxu0 %v561
    %v580 = vpop.f32.mrf.mxu0
    %v581 = vadd.f32 %v558, %v580
    %582 = vdwg.mxu0
    %583 = vst [vmem:[#allocation4] sm:$0x3] %v581
    // Predicated region
    $region54: #{tpu_custom_call.1} parent=1 // pred_check
      _
    $region55: #{tpu_custom_call.1} parent=1 // pred_check_branch
      %585 = sbr.rel (0) target = $region57
    $region56: #{tpu_custom_call.1} parent=1 // pred_region
      %587 = vsyncadd [#allocation5], 0
      %s589 = sshll.u32 [#allocation4], 4
      %s590 = int_to_ptr.vmem [resolvable:$true] %s589
      %s591 = sshll.u32 %s13, 4
      %s592 = int_to_ptr.hbm [resolvable:$true] %s591
      %594 = dma.vmem_to_hbm [thread:$0]  %s590, 32, %s592, [#allocation5]
    $region57: #{tpu_custom_call.1} parent=1 // pred_fallthru
      _
    // Predicated region
    $region58: #{tpu_custom_call.1} parent=1 // pred_check
      _
    $region59: #{tpu_custom_call.1} parent=1 // pred_check_branch
      %596 = sbr.rel (0) target = $region61
    $region60: #{tpu_custom_call.1} parent=1 // pred_region
      %598 = dma.done [#allocation5], 32
    $region61: #{tpu_custom_call.1} parent=1 // pred_fallthru
      _
    %599 = vsyncpa [#allocation5], 1

</llo_original>
